<compile_context>
chip_gen: v5e
topology: v5e:2x2
jax: 0.10.0
libtpu: 0.0.40
codegen_flags: <defaults>
</compile_context>

<pallas_src>
import functools

import jax
import jax.numpy as jnp
from jax.experimental import pallas as pl
from jax.experimental.pallas import tpu as pltpu


def _round_up(n, m):
    return ((n + m - 1) // m) * m


def _choose_tiling(batch):
    """Pick (tile_b, padded_batch).

    tile_b is a multiple of 8, capped at 512 rows (mem-bound sweet spot); for
    batch >= 16 we force >= 2 tiles so the 'parallel' grid axis can shard
    across v7x's two TensorCores.
    """
    b8 = _round_up(batch, 8)
    if b8 <= 8:
        return 8, 8
    n_tiles = max(2, -(-b8 // 512))
    tile_b = min(512, _round_up(-(-b8 // n_tiles), 8))
    return tile_b, _round_up(b8, tile_b)


# ---------------------------------------------------------------------------
# Fused-MLP Pallas kernel
# ---------------------------------------------------------------------------
def _mlp_kernel(x_ref, *refs, num_layers):
    """refs = (w0, b0, w1, b1, ..., w_{L-1}, b_{L-1}, o_ref).

    x_ref: (tile_b, in_f); w_i: (in_i, out_i) pre-transposed (+ zero-padded
    where needed); b_i: (1, out_i) f32.  Hidden layers use sigmoid; the last
    layer is linear (matches torch Net.forward).
    """
    o_ref = refs[-1]
    h = x_ref[...].astype(jnp.float32)
    for i in range(num_layers):          # static unroll over layers
        w = refs[2 * i][...]
        b = refs[2 * i + 1][...]
        # Cast activations to the stored weight dtype (f32 or bf16); MXU
        # accumulates in f32 either way.
        h = jnp.dot(h.astype(w.dtype), w, preferred_element_type=jnp.float32)
        h = h + b
        if i < num_layers - 1:
            h = jax.nn.sigmoid(h)        # exp + reciprocal on the EUP, in f32
    o_ref[...] = h.astype(o_ref.dtype)


@functools.partial(jax.jit, static_argnames=("tile_b", "out_n"))
def _mlp_forward(x_pad, weights, biases, *, tile_b, out_n):
    """x_pad: (b_pad, in_f) with b_pad % tile_b == 0."""
    b_pad, in_f = x_pad.shape
    num_layers = len(weights)
    grid = (b_pad // tile_b,)

    # Weights/biases: whole-array, single-resident VMEM refs (their index_map
    # would be constant across the grid -> no point double-buffering them).
    const_vmem = pl.BlockSpec(memory_space=pltpu.MemorySpace.VMEM)

    in_specs = [pl.BlockSpec((tile_b, in_f), lambda i: (i, 0))]
    operands = [x_pad]
    for w, b in zip(weights, biases):
        in_specs += [const_vmem, const_vmem]
        operands += [w, b]

    # Explicit VMEM budget (sized against v7x's 64 MiB physical VMEM):
    # params are single-resident, x/out blocks double-buffered, plus headroom
    # for in-flight activations.
    param_bytes = sum(int(w.size) * w.dtype.itemsize for w in weights)
    param_bytes += sum(int(b.size) * b.dtype.itemsize for b in biases)
    max_width = max([in_f] + [int(w.shape[1]) for w in weights])
    need = (param_bytes
            + 2 * tile_b * (in_f + out_n) * 4
            + 4 * tile_b * max_width * 4)
    vmem_limit = int(min(48 * 1024 * 1024, max(16 * 1024 * 1024, 2 * need)))

    kernel = functools.partial(_mlp_kernel, num_layers=num_layers)
    return pl.pallas_call(
        kernel,
        out_shape=jax.ShapeDtypeStruct((b_pad, out_n), x_pad.dtype),
        grid=grid,
        in_specs=in_specs,
        out_specs=pl.BlockSpec((tile_b, out_n), lambda i: (i, 0)),
        compiler_params=pltpu.CompilerParams(
            dimension_semantics=("parallel",),   # batch tiles shard across TCs
            vmem_limit_bytes=vmem_limit,
        ),
    )(*operands)


# ---------------------------------------------------------------------------
# Net: MLP with sigmoid hidden activations, linear output (matches torch Net)
# ---------------------------------------------------------------------------
class Net:
    def __init__(self, inputN, layers, outputN, key, matmul_dtype=jnp.float32):
        self.inputN = int(inputN)
        self.outputN = int(outputN)
        dims = [int(inputN)] + [int(l) for l in layers] + [int(outputN)]
        n_layers = len(dims) - 1

        self.weights = []     # pre-transposed (+padded) in matmul_dtype
        self.biases = []      # (1, out_p) f32
        self.raw_params = []  # unpadded torch-layout f32 masters, for reference

        for li, (in_f, out_f) in enumerate(zip(dims[:-1], dims[1:])):
            key, kw, kb = jax.random.split(key, 3)
            bound = 1.0 / float(in_f) ** 0.5   # PyTorch nn.Linear default init
            w = jax.random.uniform(kw, (out_f, in_f), jnp.float32, -bound, bound)
            b = jax.random.uniform(kb, (out_f,), jnp.float32, -bound, bound)
            self.raw_params.append((w, b))

            # First layer keeps the real input width (x never feature-padded);
            # hidden inputs pad to 128 with ZERO rows (cancels sigmoid(0)=0.5
            # in padded columns of the previous layer).
            in_p = in_f if li == 0 else _round_up(in_f, 128)
            # Hidden outputs pad to lane-dense 128; the LAST layer keeps the
            # real outputN so the kernel writes an unpadded output.
            out_p = out_f if li == n_layers - 1 else _round_up(out_f, 128)

            w_t_pad = jnp.pad(w.T, ((0, in_p - in_f), (0, out_p - out_f)))
            self.weights.append(w_t_pad.astype(matmul_dtype))
            self.biases.append(
                jnp.pad(b, (0, out_p - out_f)).reshape(1, out_p).astype(jnp.float32))

    def forward(self, x):
        B, in_f = x.shape
        assert in_f == self.inputN
        tile_b, b_pad = _choose_tiling(B)
        if b_pad != B:
            x = jnp.pad(x, ((0, b_pad - B), (0, 0)))   # zero batch rows only
        out = _mlp_forward(x, tuple(self.weights), tuple(self.biases),
                           tile_b=tile_b, out_n=self.outputN)
        return out if b_pad == B else out[:B]

    # TODO(synk): cacheParameter/applyCachedParameter/initParam/train (SGD+MSE
    # training loop) are host-side utilities outside forward(); not ported.


# ---------------------------------------------------------------------------
if __name__ == "__main__":
    key = jax.random.PRNGKey(0)
    key, kx, kx2, kp = jax.random.split(key, 4)

    batch, inputN, layers, outputN = 8, 64, (32, 32), 4
    x = jax.random.normal(kx, (batch, inputN), jnp.float32)

    # f32 path (exact): B=8 -> grid=(1,), zero wrapper pad/slice ops.
    net = Net(inputN, layers, outputN, kp)
    out = jax.block_until_ready(net.forward(x))

    def reference(net_obj, xin):
        r = xin
        for w, b in net_obj.raw_params[:-1]:
            r = jax.nn.sigmoid(r @ w.T + b)
        w_out, b_out = net_obj.raw_params[-1]
        return r @ w_out.T + b_out

    ref = reference(net, x)
    assert out.shape == (batch, outputN)
    assert jnp.allclose(out, ref, atol=1e-5, rtol=1e-5)

    # Larger batch: exercises the >=2-tile 'parallel' grid (v7x megacore path).
    x_big = jax.random.normal(kx2, (32, inputN), jnp.float32)
    out_big = jax.block_until_ready(net.forward(x_big))
    assert out_big.shape == (32, outputN)
    assert jnp.allclose(out_big, reference(net, x_big), atol=1e-5, rtol=1e-5)

    # bf16-matmul option (v6e/v7x MXU lever): f32 accumulation + f32 sigmoid,
    # so only matmul-input rounding differs -> loose tolerance.
    net_bf16 = Net(inputN, layers, outputN, kp, matmul_dtype=jnp.bfloat16)
    out_bf16 = jax.block_until_ready(net_bf16.forward(x))
    assert out_bf16.shape == (batch, outputN)
    assert jnp.allclose(out_bf16, reference(net_bf16, x), atol=1e-1, rtol=1e-1)

    print("KERNEL_OK")
</pallas_src>

<mosaic_0001>
module attributes {stable_mosaic.version = 11 : i64} {
  func.func @_mlp_kernel(%arg0: i32, %arg1: memref<8x64xf32, #tpu.memory_space<vmem>>, %arg2: memref<64x128xf32, #tpu.memory_space<vmem>>, %arg3: memref<1x128xf32, #tpu.memory_space<vmem>>, %arg4: memref<128x128xf32, #tpu.memory_space<vmem>>, %arg5: memref<1x128xf32, #tpu.memory_space<vmem>>, %arg6: memref<128x4xf32, #tpu.memory_space<vmem>>, %arg7: memref<1x4xf32, #tpu.memory_space<vmem>>, %arg8: memref<8x4xf32, #tpu.memory_space<vmem>>) attributes {dimension_semantics = [#tpu.dimension_semantics<parallel>], iteration_bounds = array<i64: 1>, scalar_prefetch = 0 : i64, scratch_operands = 0 : i64, tpu.core_type = #tpu.core_type<tc>, window_params = [{transform_indices = @transform_0, window_bounds = array<i64: 8, 64>}, {pipeline_mode = #tpu.pipeline_mode<synchronous>, transform_indices = @transform_1, window_bounds = array<i64: 64, 128>}, {pipeline_mode = #tpu.pipeline_mode<synchronous>, transform_indices = @transform_2, window_bounds = array<i64: 1, 128>}, {pipeline_mode = #tpu.pipeline_mode<synchronous>, transform_indices = @transform_3, window_bounds = array<i64: 128, 128>}, {pipeline_mode = #tpu.pipeline_mode<synchronous>, transform_indices = @transform_4, window_bounds = array<i64: 1, 128>}, {pipeline_mode = #tpu.pipeline_mode<synchronous>, transform_indices = @transform_5, window_bounds = array<i64: 128, 4>}, {pipeline_mode = #tpu.pipeline_mode<synchronous>, transform_indices = @transform_6, window_bounds = array<i64: 1, 4>}, {transform_indices = @transform_7, window_bounds = array<i64: 8, 4>}]} {
    %c0 = arith.constant 0 : index
    %c0_0 = arith.constant 0 : index
    %0 = vector.load %arg1[%c0, %c0_0] : memref<8x64xf32, #tpu.memory_space<vmem>>, vector<8x64xf32>
    %c0_1 = arith.constant 0 : index
    %c0_2 = arith.constant 0 : index
    %1 = vector.load %arg2[%c0_1, %c0_2] : memref<64x128xf32, #tpu.memory_space<vmem>>, vector<64x128xf32>
    %c0_3 = arith.constant 0 : index
    %c0_4 = arith.constant 0 : index
    %2 = vector.load %arg3[%c0_3, %c0_4] : memref<1x128xf32, #tpu.memory_space<vmem>>, vector<1x128xf32>
    %cst = arith.constant dense<0.000000e+00> : vector<8x128xf32>
    %3 = tpu.matmul %0, %1, %cst {dimension_numbers = #tpu.dot_dimension_numbers<[1], [0], [0], [1], [0, 0, 1, 1], [], []>} : vector<8x64xf32>, vector<64x128xf32>, vector<8x128xf32> -> vector<8x128xf32>
    %4 = vector.broadcast %2 : vector<1x128xf32> to vector<8x128xf32>
    %5 = arith.addf %3, %4 : vector<8x128xf32>
    %6 = arith.negf %5 : vector<8x128xf32>
    %7 = math.exp %6 : vector<8x128xf32>
    %cst_5 = arith.constant 1.000000e+00 : f32
    %8 = vector.broadcast %cst_5 : f32 to vector<8x128xf32>
    %9 = arith.addf %8, %7 : vector<8x128xf32>
    %10 = arith.divf %8, %9 : vector<8x128xf32>
    %c0_6 = arith.constant 0 : index
    %c0_7 = arith.constant 0 : index
    %11 = vector.load %arg4[%c0_6, %c0_7] : memref<128x128xf32, #tpu.memory_space<vmem>>, vector<128x128xf32>
    %c0_8 = arith.constant 0 : index
    %c0_9 = arith.constant 0 : index
    %12 = vector.load %arg5[%c0_8, %c0_9] : memref<1x128xf32, #tpu.memory_space<vmem>>, vector<1x128xf32>
    %cst_10 = arith.constant dense<0.000000e+00> : vector<8x128xf32>
    %13 = tpu.matmul %10, %11, %cst_10 {dimension_numbers = #tpu.dot_dimension_numbers<[1], [0], [0], [1], [0, 0, 1, 1], [], []>} : vector<8x128xf32>, vector<128x128xf32>, vector<8x128xf32> -> vector<8x128xf32>
    %14 = vector.broadcast %12 : vector<1x128xf32> to vector<8x128xf32>
    %15 = arith.addf %13, %14 : vector<8x128xf32>
    %16 = arith.negf %15 : vector<8x128xf32>
    %17 = math.exp %16 : vector<8x128xf32>
    %cst_11 = arith.constant 1.000000e+00 : f32
    %18 = vector.broadcast %cst_11 : f32 to vector<8x128xf32>
    %19 = arith.addf %18, %17 : vector<8x128xf32>
    %20 = arith.divf %18, %19 : vector<8x128xf32>
    %c0_12 = arith.constant 0 : index
    %c0_13 = arith.constant 0 : index
    %21 = vector.load %arg6[%c0_12, %c0_13] : memref<128x4xf32, #tpu.memory_space<vmem>>, vector<128x4xf32>
    %c0_14 = arith.constant 0 : index
    %c0_15 = arith.constant 0 : index
    %22 = vector.load %arg7[%c0_14, %c0_15] : memref<1x4xf32, #tpu.memory_space<vmem>>, vector<1x4xf32>
    %cst_16 = arith.constant dense<0.000000e+00> : vector<8x4xf32>
    %23 = tpu.matmul %20, %21, %cst_16 {dimension_numbers = #tpu.dot_dimension_numbers<[1], [0], [0], [1], [0, 0, 1, 1], [], []>} : vector<8x128xf32>, vector<128x4xf32>, vector<8x4xf32> -> vector<8x4xf32>
    %24 = vector.broadcast %22 : vector<1x4xf32> to vector<8x4xf32>
    %25 = arith.addf %23, %24 : vector<8x4xf32>
    %c0_17 = arith.constant 0 : index
    %c0_18 = arith.constant 0 : index
    %26 = vector.load %arg8[%c0_17, %c0_18] : memref<8x4xf32, #tpu.memory_space<vmem>>, vector<8x4xf32>
    tpu.vector_store %arg8[%c0_17, %c0_18], %25 {strides = array<i32>} : memref<8x4xf32, #tpu.memory_space<vmem>>, vector<8x4xf32>,
    return
  }
  func.func @transform_0(%arg0: i32) -> (i32, i32) {
    %c0_i32 = arith.constant 0 : i32
    %c0_i32_0 = arith.constant 0 : i32
    return %arg0, %c0_i32 : i32, i32
  }
  func.func @transform_1(%arg0: i32) -> (i32, i32) {
    %c0_i32 = arith.constant 0 : i32
    %c0_i32_0 = arith.constant 0 : i32
    %c0_i32_1 = arith.constant 0 : i32
    return %c0_i32, %c0_i32_0 : i32, i32
  }
  func.func @transform_2(%arg0: i32) -> (i32, i32) {
    %c0_i32 = arith.constant 0 : i32
    %c0_i32_0 = arith.constant 0 : i32
    %c0_i32_1 = arith.constant 0 : i32
    return %c0_i32, %c0_i32_0 : i32, i32
  }
  func.func @transform_3(%arg0: i32) -> (i32, i32) {
    %c0_i32 = arith.constant 0 : i32
    %c0_i32_0 = arith.constant 0 : i32
    %c0_i32_1 = arith.constant 0 : i32
    return %c0_i32, %c0_i32_0 : i32, i32
  }
  func.func @transform_4(%arg0: i32) -> (i32, i32) {
    %c0_i32 = arith.constant 0 : i32
    %c0_i32_0 = arith.constant 0 : i32
    %c0_i32_1 = arith.constant 0 : i32
    return %c0_i32, %c0_i32_0 : i32, i32
  }
  func.func @transform_5(%arg0: i32) -> (i32, i32) {
    %c0_i32 = arith.constant 0 : i32
    %c0_i32_0 = arith.constant 0 : i32
    %c0_i32_1 = arith.constant 0 : i32
    return %c0_i32, %c0_i32_0 : i32, i32
  }
  func.func @transform_6(%arg0: i32) -> (i32, i32) {
    %c0_i32 = arith.constant 0 : i32
    %c0_i32_0 = arith.constant 0 : i32
    %c0_i32_1 = arith.constant 0 : i32
    return %c0_i32, %c0_i32_0 : i32, i32
  }
  func.func @transform_7(%arg0: i32) -> (i32, i32) {
    %c0_i32 = arith.constant 0 : i32
    %c0_i32_0 = arith.constant 0 : i32
    return %arg0, %c0_i32 : i32, i32
  }
}

</mosaic_0001>

<llo_original>
// kernel: _mlp_forward.1
$region0: #{_mlp_forward.1}
  #allocation0 [shape = 'u32[]', space=smem, size = 0x4, offset = 0x4, fixed_abs, tag = 'smem constant byte address 0x4 - core index']
  #allocation1 [shape = 'u32[72,128]{1,0:T(1,128)}', space=vmem, size = 0x9000, scoped, tag = 'internal scratch']
  %s0 = inlined_call_operand.hbm [shape: f32[8,64], index: 0, kind: input, shape index: {}]
  %s1 = inlined_call_operand.hbm [shape: f32[64,128], index: 1, kind: input, shape index: {}]
  %s2 = inlined_call_operand.vmem [shape: f32[1,128], index: 2, kind: input, shape index: {}]
  %s3 = inlined_call_operand.vmem [shape: f32[128,128], index: 3, kind: input, shape index: {}]
  %s4 = inlined_call_operand.vmem [shape: f32[1,128], index: 4, kind: input, shape index: {}]
  %s5 = inlined_call_operand.vmem [shape: f32[128,4], index: 5, kind: input, shape index: {}]
  %s6 = inlined_call_operand.vmem [shape: f32[1,4], index: 6, kind: input, shape index: {}]
  %s7 = inlined_call_operand.vmem [shape: f32[8,4], index: 7, kind: output, shape index: {}]
  %s8 = sld [smem:[#allocation0]]
  $region46: #{_mlp_forward.1} parent=0
    _
  %s10 = ssub.s32 1, %s8
  %s11 = scalar_select 0, %s10, %s8
  $region1: #{_mlp_forward.1} parent=0
    #allocation2 [shape = 'u8[4096]{0}', space=vmem, size = 0x1000, scoped, tag = 'input window, operand 0, single buffered']
    #allocation3 [shape = 's32[1]{0}', space=sflag, size = 0x4, scoped, tag = 'scoped memory for _mlp_forward.1']
    #allocation4 [shape = 'u8[32768]{0}', space=vmem, size = 0x8000, scoped, tag = 'input window, operand 1, single buffered']
    #allocation5 [shape = 's32[1]{0}', space=sflag, size = 0x4, scoped, tag = 'scoped memory for _mlp_forward.1']
    %12 = vsyncpa [#allocation3], 0
    %13 = vsyncpa [#allocation5], 0
    // Predicated region
    $region2: #{_mlp_forward.1} parent=1 // pred_check
      _
    $region3: #{_mlp_forward.1} parent=1 // pred_check_branch
      %15 = sbr.rel (0) target = $region5
    $region4: #{_mlp_forward.1} parent=1 // pred_region
      %17 = vsyncadd [#allocation3], 0
      %s19 = sshll.u32 %s0, 4
      %s20 = int_to_ptr.hbm [resolvable:$true] %s19
      %s21 = sshll.u32 [#allocation2], 4
      %s22 = int_to_ptr.vmem [resolvable:$true] %s21
      %24 = dma.hbm_to_vmem [thread:$0]  %s20, 128, %s22, [#allocation3]
    $region5: #{_mlp_forward.1} parent=1 // pred_fallthru
      _
    // Predicated region
    $region6: #{_mlp_forward.1} parent=1 // pred_check
      _
    $region7: #{_mlp_forward.1} parent=1 // pred_check_branch
      %26 = sbr.rel (0) target = $region9
    $region8: #{_mlp_forward.1} parent=1 // pred_region
      %28 = vsyncadd [#allocation5], 0
      %s29 = sshll.u32 %s1, 4
      %s30 = int_to_ptr.hbm [resolvable:$true] %s29
      %s31 = sshll.u32 [#allocation4], 4
      %s32 = int_to_ptr.vmem [resolvable:$true] %s31
      %37 = dma.hbm_to_vmem [thread:$0]  %s30, 1024, %s32, [#allocation5], 128, 128, 8
    $region9: #{_mlp_forward.1} parent=1 // pred_fallthru
      _
    // Predicated region
    $region10: #{_mlp_forward.1} parent=1 // pred_check
      _
    $region11: #{_mlp_forward.1} parent=1 // pred_check_branch
      %39 = sbr.rel (0) target = $region13
    $region12: #{_mlp_forward.1} parent=1 // pred_region
      _
    $region13: #{_mlp_forward.1} parent=1 // pred_fallthru
      _
    // Predicated region
    $region14: #{_mlp_forward.1} parent=1 // pred_check
      _
    $region15: #{_mlp_forward.1} parent=1 // pred_check_branch
      %41 = sbr.rel (0) target = $region17
    $region16: #{_mlp_forward.1} parent=1 // pred_region
      _
    $region17: #{_mlp_forward.1} parent=1 // pred_fallthru
      _
    // Predicated region
    $region18: #{_mlp_forward.1} parent=1 // pred_check
      _
    $region19: #{_mlp_forward.1} parent=1 // pred_check_branch
      %43 = sbr.rel (0) target = $region21
    $region20: #{_mlp_forward.1} parent=1 // pred_region
      _
    $region21: #{_mlp_forward.1} parent=1 // pred_fallthru
      _
    // Predicated region
    $region22: #{_mlp_forward.1} parent=1 // pred_check
      _
    $region23: #{_mlp_forward.1} parent=1 // pred_check_branch
      %45 = sbr.rel (0) target = $region25
    $region24: #{_mlp_forward.1} parent=1 // pred_region
      _
    $region25: #{_mlp_forward.1} parent=1 // pred_fallthru
      _
    // Predicated region
    $region26: #{_mlp_forward.1} parent=1 // pred_check
      _
    $region27: #{_mlp_forward.1} parent=1 // pred_check_branch
      %47 = sbr.rel (0) target = $region29
    $region28: #{_mlp_forward.1} parent=1 // pred_region
      _
    $region29: #{_mlp_forward.1} parent=1 // pred_fallthru
      _
    // Predicated region
    $region30: #{_mlp_forward.1} parent=1 // pred_check
      _
    $region31: #{_mlp_forward.1} parent=1 // pred_check_branch
      %49 = sbr.rel (0) target = $region33
    $region32: #{_mlp_forward.1} parent=1 // pred_region
      %51 = dma.done [#allocation3], 128
    $region33: #{_mlp_forward.1} parent=1 // pred_fallthru
      _
    // Predicated region
    $region34: #{_mlp_forward.1} parent=1 // pred_check
      _
    $region35: #{_mlp_forward.1} parent=1 // pred_check_branch
      %53 = sbr.rel (0) target = $region37
    $region36: #{_mlp_forward.1} parent=1 // pred_region
      %55 = dma.done [#allocation5], 1024
    $region37: #{_mlp_forward.1} parent=1 // pred_fallthru
      _
    %v56 = vld [vmem:[#allocation2] sm:$0xff]
    %v57 = vld [vmem:[#allocation4] sm:$0xff]
    %v58 = vld [vmem:[#allocation4 + $0x8] sm:$0xff]
    %v59 = vld [vmem:[#allocation4 + $0x10] sm:$0xff]
    %v60 = vld [vmem:[#allocation4 + $0x18] sm:$0xff]
    %v61 = vld [vmem:[#allocation4 + $0x20] sm:$0xff]
    %v62 = vld [vmem:[#allocation4 + $0x28] sm:$0xff]
    %v63 = vld [vmem:[#allocation4 + $0x30] sm:$0xff]
    %v64 = vld [vmem:[#allocation4 + $0x38] sm:$0xff]
    %v65 = vld [vmem:[%s2] sm:$0x1]
    %v67 = vperm.slane %v65, 0
    %vm69 = vcmask 523264
    %v71 = vsel %vm69, %v56, 0
    %73 = vmatpush.msra.mxu0 0.0
    %74 = vmatpush.msra.mxu0 0.0
    %75 = vmatpush.msra.mxu0 0.0
    %76 = vmatpush.msra.mxu0 0.0
    %77 = vmatpush.msra.mxu0 0.0
    %78 = vmatpush.msra.mxu0 0.0
    %79 = vmatpush.msra.mxu0 0.0
    %80 = vmatpush.msra.mxu0 0.0
    %81 = vmatpush.msra.mxu0 %v64
    %82 = vmatpush.msra.mxu0 %v63
    %83 = vmatpush.msra.mxu0 %v62
    %84 = vmatpush.msra.mxu0 %v61
    %85 = vmatpush.msra.mxu0 %v60
    %86 = vmatpush.msra.mxu0 %v59
    %87 = vmatpush.msra.mxu0 %v58
    %88 = vmatpush.msra.mxu0 %v57
    %89 = vmatmul.f32.gmra.mxu0 %v71
    %v90 = vpop.f32.mrf.mxu0
    %v91 = vadd.f32 %v67, %v90
    %92 = vdwg.mxu0
    %v93 = vxor.u32 %v91, 2147483648
    %v94 = vmul.f32 %v93, 1.442695
    %v95 = vpow.pop %v94
    %v96 = vadd.f32 %v95, 1.0
    %v97 = vrcp.pop %v96
    %v98 = vmul.f32 %v96, %v97
    %v99 = vsub.f32 1.0, %v98
    %v100 = vmul.f32 %v97, %v99
    %v101 = vadd.f32 %v97, %v100
    %vm102 = vweird.f32 %v96
    %vm103 = vweird.f32 %v97
    %vm104 = vmor %vm102, %vm103
    %v105 = vsel %vm104, %v97, %v101
    %v106 = vand.u32 2147483647, %v96
    %vm107 = vcmp.eq.f32.partialorder %v106, 8.507059e+37
    %v108 = vand.u32 %v96, 2147483648
    %v109 = vor.u32 1.1754944e-38, %v108
    %v110 = vsel %vm107, %v109, %v105
    %v111 = vmul.f32 1.0, %v110
    %v112 = vld [vmem:[%s3] sm:$0xff]
    %v113 = vld [vmem:[%s3 + $0x8] sm:$0xff]
    %v114 = vld [vmem:[%s3 + $0x10] sm:$0xff]
    %v115 = vld [vmem:[%s3 + $0x18] sm:$0xff]
    %v116 = vld [vmem:[%s3 + $0x20] sm:$0xff]
    %v117 = vld [vmem:[%s3 + $0x28] sm:$0xff]
    %v118 = vld [vmem:[%s3 + $0x30] sm:$0xff]
    %v119 = vld [vmem:[%s3 + $0x38] sm:$0xff]
    %v120 = vld [vmem:[%s3 + $0x40] sm:$0xff]
    %v121 = vld [vmem:[%s3 + $0x48] sm:$0xff]
    %v122 = vld [vmem:[%s3 + $0x50] sm:$0xff]
    %v123 = vld [vmem:[%s3 + $0x58] sm:$0xff]
    %v124 = vld [vmem:[%s3 + $0x60] sm:$0xff]
    %v125 = vld [vmem:[%s3 + $0x68] sm:$0xff]
    %v126 = vld [vmem:[%s3 + $0x70] sm:$0xff]
    %v127 = vld [vmem:[%s3 + $0x78] sm:$0xff]
    %v128 = vld [vmem:[%s4] sm:$0x1]
    %v130 = vperm.slane %v128, 0
    %132 = vmatpush.msra.mxu0 %v127
    %133 = vmatpush.msra.mxu0 %v126
    %134 = vmatpush.msra.mxu0 %v125
    %135 = vmatpush.msra.mxu0 %v124
    %136 = vmatpush.msra.mxu0 %v123
    %137 = vmatpush.msra.mxu0 %v122
    %138 = vmatpush.msra.mxu0 %v121
    %139 = vmatpush.msra.mxu0 %v120
    %140 = vmatpush.msra.mxu0 %v119
    %141 = vmatpush.msra.mxu0 %v118
    %142 = vmatpush.msra.mxu0 %v117
    %143 = vmatpush.msra.mxu0 %v116
    %144 = vmatpush.msra.mxu0 %v115
    %145 = vmatpush.msra.mxu0 %v114
    %146 = vmatpush.msra.mxu0 %v113
    %147 = vmatpush.msra.mxu0 %v112
    %148 = vmatmul.f32.gmra.mxu0 %v111
    %v149 = vpop.f32.mrf.mxu0
    %v150 = vadd.f32 %v130, %v149
    %151 = vdwg.mxu0
    %v152 = vxor.u32 %v150, 2147483648
    %v153 = vmul.f32 %v152, 1.442695
    %v154 = vpow.pop %v153
    %v155 = vadd.f32 %v154, 1.0
    %v156 = vrcp.pop %v155
    %v157 = vmul.f32 %v155, %v156
    %v158 = vsub.f32 1.0, %v157
    %v159 = vmul.f32 %v156, %v158
    %v160 = vadd.f32 %v156, %v159
    %vm161 = vweird.f32 %v155
    %vm162 = vweird.f32 %v156
    %vm163 = vmor %vm161, %vm162
    %v164 = vsel %vm163, %v156, %v160
    %v165 = vand.u32 2147483647, %v155
    %vm166 = vcmp.eq.f32.partialorder %v165, 8.507059e+37
    %v167 = vand.u32 %v155, 2147483648
    %v168 = vor.u32 1.1754944e-38, %v167
    %v169 = vsel %vm166, %v168, %v164
    %v170 = vmul.f32 1.0, %v169
    %v171 = vld [vmem:[%s5] sm:$0xff]
    %v172 = vld [vmem:[%s5 + $0x8] sm:$0xff]
    %v173 = vld [vmem:[%s5 + $0x10] sm:$0xff]
    %v174 = vld [vmem:[%s5 + $0x18] sm:$0xff]
    %v175 = vld [vmem:[%s5 + $0x20] sm:$0xff]
    %v176 = vld [vmem:[%s5 + $0x28] sm:$0xff]
    %v177 = vld [vmem:[%s5 + $0x30] sm:$0xff]
    %v178 = vld [vmem:[%s5 + $0x38] sm:$0xff]
    %v179 = vld [vmem:[%s5 + $0x40] sm:$0xff]
    %v180 = vld [vmem:[%s5 + $0x48] sm:$0xff]
    %v181 = vld [vmem:[%s5 + $0x50] sm:$0xff]
    %v182 = vld [vmem:[%s5 + $0x58] sm:$0xff]
    %v183 = vld [vmem:[%s5 + $0x60] sm:$0xff]
    %v184 = vld [vmem:[%s5 + $0x68] sm:$0xff]
    %v185 = vld [vmem:[%s5 + $0x70] sm:$0xff]
    %v186 = vld [vmem:[%s5 + $0x78] sm:$0xff]
    %v187 = vld [vmem:[%s6] sm:$0x1]
    %v189 = vperm.slane %v187, 0
    %191 = vmatpush.msra.mxu0 %v186
    %192 = vmatpush.msra.mxu0 %v185
    %193 = vmatpush.msra.mxu0 %v184
    %194 = vmatpush.msra.mxu0 %v183
    %195 = vmatpush.msra.mxu0 %v182
    %196 = vmatpush.msra.mxu0 %v181
    %197 = vmatpush.msra.mxu0 %v180
    %198 = vmatpush.msra.mxu0 %v179
    %199 = vmatpush.msra.mxu0 %v178
    %200 = vmatpush.msra.mxu0 %v177
    %201 = vmatpush.msra.mxu0 %v176
    %202 = vmatpush.msra.mxu0 %v175
    %203 = vmatpush.msra.mxu0 %v174
    %204 = vmatpush.msra.mxu0 %v173
    %205 = vmatpush.msra.mxu0 %v172
    %206 = vmatpush.msra.mxu0 %v171
    %207 = vmatmul.f32.gmra.mxu0 %v170
    %v208 = vpop.f32.mrf.mxu0
    %v209 = vadd.f32 %v189, %v208
    %210 = vdwg.mxu0
    %vm211 = vcmask 31744
    %212 = vst.msk [vmem:[%s7] sm:$0xff] %vm211, %v209
    // Predicated region
    $region38: #{_mlp_forward.1} parent=1 // pred_check
      _
    $region39: #{_mlp_forward.1} parent=1 // pred_check_branch
      %214 = sbr.rel (0) target = $region41
    $region40: #{_mlp_forward.1} parent=1 // pred_region
      _
    $region41: #{_mlp_forward.1} parent=1 // pred_fallthru
      _
    // Predicated region
    $region42: #{_mlp_forward.1} parent=1 // pred_check
      _
    $region43: #{_mlp_forward.1} parent=1 // pred_check_branch
      %216 = sbr.rel (0) target = $region45
    $region44: #{_mlp_forward.1} parent=1 // pred_region
      _
    $region45: #{_mlp_forward.1} parent=1 // pred_fallthru
      _
    %217 = vsyncpa [#allocation3], 1
    %218 = vsyncpa [#allocation5], 1

</llo_original>
